<compile_context>
chip_gen: v5e
topology: v5e:2x2
jax: 0.10.0
libtpu: 0.0.40
codegen_flags: <defaults>
</compile_context>

<pallas_src>
import jax
import jax.numpy as jnp
from jax.experimental import pallas as pl
from jax.experimental.pallas import tpu as pltpu


def mlp_kernel(alpha_ref,                      # SMEM (3,) PReLU params (f32)
               x_ref,                          # (bm, in_p)       compute dtype
               w1_ref, b1_ref,                 # (in_p, hid_p),  (1, hid_p) f32
               w2_ref, b2_ref,                 # (hid_p, hid_p), (1, hid_p) f32
               w3_ref, b3_ref,                 # (hid_p, hid_p), (1, hid_p) f32
               w4_ref, b4_ref,                 # (hid_p, out_p), (1, out_p) f32
               o_ref):                         # (bm, out_p) f32
    # Hoist scalar SMEM reads so they don't interleave with MXU pushes.
    a1 = alpha_ref[0]
    a2 = alpha_ref[1]
    a3 = alpha_ref[2]

    cdt = w1_ref.dtype                         # compute dtype (bf16 or f32)
    x = x_ref[...]

    # Layer 1: Linear (+ Dropout = identity at inference) + PReLU (f32 VPU)
    h = jnp.dot(x, w1_ref[...], preferred_element_type=jnp.float32) + b1_ref[...]
    h = jnp.where(h > 0, h, a1 * h)

    # Layer 2
    h = jnp.dot(h.astype(cdt), w2_ref[...],
                preferred_element_type=jnp.float32) + b2_ref[...]
    h = jnp.where(h > 0, h, a2 * h)

    # Layer 3
    h = jnp.dot(h.astype(cdt), w3_ref[...],
                preferred_element_type=jnp.float32) + b3_ref[...]
    h = jnp.where(h > 0, h, a3 * h)

    # Output layer (no activation)
    out = jnp.dot(h.astype(cdt), w4_ref[...],
                  preferred_element_type=jnp.float32) + b4_ref[...]
    o_ref[...] = out.astype(o_ref.dtype)


def _round_up(n, m):
    return ((n + m - 1) // m) * m


def _pad2(a, rows, cols):
    pr, pc = rows - a.shape[0], cols - a.shape[1]
    if pr or pc:
        a = jnp.pad(a, ((0, pr), (0, pc)))
    return a


def mlp_forward(x, params, *, bm=256, compute_dtype=jnp.bfloat16):
    """x: [B, input_dim] float32.  params: dict of f32 weights/biases/alphas.

    Weights are stored pre-transposed as [in, out]; the kernel computes
    y = x @ W + b on the MXU.  Returns f32 [B, output_dim].
    """
    B, input_dim = x.shape
    hidden_dim = params["w1"].shape[1]
    output_dim = params["w4"].shape[1]

    # ---- pad feature dims to lane width (128) and batch to the tile --------
    in_p = _round_up(input_dim, 128)
    hid_p = _round_up(hidden_dim, 128)
    out_p = _round_up(output_dim, 128)

    B_pad = _round_up(B, 8)
    bm_eff = min(bm, B_pad)            # don't tile wider than the batch
    B_pad = _round_up(B_pad, bm_eff)
    grid = (B_pad // bm_eff,)
    # NOTE: for production sizes keep grid >= 2 so v7x's 2 TensorCores both
    # get work (dimension_semantics=("parallel",) shards the grid).

    # ---- one-time casts / zero-padding in the wrapper ----------------------
    xp = _pad2(x, B_pad, in_p).astype(compute_dtype)
    w1 = _pad2(params["w1"], in_p, hid_p).astype(compute_dtype)
    w2 = _pad2(params["w2"], hid_p, hid_p).astype(compute_dtype)
    w3 = _pad2(params["w3"], hid_p, hid_p).astype(compute_dtype)
    w4 = _pad2(params["w4"], hid_p, out_p).astype(compute_dtype)
    b1 = _pad2(params["b1"], 1, hid_p)                 # keep biases f32
    b2 = _pad2(params["b2"], 1, hid_p)
    b3 = _pad2(params["b3"], 1, hid_p)
    b4 = _pad2(params["b4"], 1, out_p)
    alphas = params["alphas"].astype(jnp.float32)

    def rep(shape):
        # full weight/bias block, same block every grid step (stays resident)
        return pl.BlockSpec(shape, lambda i: (0, 0))

    # ---- VMEM budget (weights resident, inputs double-buffered) ------------
    cbytes = jnp.dtype(compute_dtype).itemsize
    weight_bytes = (in_p * hid_p + 2 * hid_p * hid_p + hid_p * out_p) * cbytes
    bias_bytes = (3 * hid_p + out_p) * 4
    io_bytes = bm_eff * in_p * cbytes + bm_eff * out_p * 4
    act_bytes = 4 * bm_eff * hid_p * 4                  # f32 activation headroom
    vmem_needed = 2 * (weight_bytes + bias_bytes + io_bytes) + act_bytes
    vmem_limit = int(min(64 * 1024 * 1024, max(32 * 1024 * 1024, 2 * vmem_needed)))
    # TODO(synk): for very large hidden_dim, K-tile the weights (accumulator
    # over a reduction grid axis) instead of holding them resident in VMEM.

    flops = 2 * B_pad * (in_p * hid_p + 2 * hid_p * hid_p + hid_p * out_p)
    bytes_accessed = int(weight_bytes + bias_bytes
                         + B_pad * in_p * cbytes + B_pad * out_p * 4)

    out_padded = pl.pallas_call(
        mlp_kernel,
        out_shape=jax.ShapeDtypeStruct((B_pad, out_p), jnp.float32),
        grid_spec=pltpu.PrefetchScalarGridSpec(
            num_scalar_prefetch=0,
            grid=grid,
            in_specs=[
                pl.BlockSpec(memory_space=pltpu.MemorySpace.SMEM),   # alphas
                pl.BlockSpec((bm_eff, in_p), lambda i: (i, 0)),      # x tile
                rep((in_p, hid_p)), rep((1, hid_p)),                 # w1, b1
                rep((hid_p, hid_p)), rep((1, hid_p)),                # w2, b2
                rep((hid_p, hid_p)), rep((1, hid_p)),                # w3, b3
                rep((hid_p, out_p)), rep((1, out_p)),                # w4, b4
            ],
            out_specs=pl.BlockSpec((bm_eff, out_p), lambda i: (i, 0)),
        ),
        compiler_params=pltpu.CompilerParams(
            dimension_semantics=("parallel",),
            vmem_limit_bytes=vmem_limit),
        cost_estimate=pl.CostEstimate(
            flops=int(flops), transcendentals=0, bytes_accessed=bytes_accessed),
    )(alphas, xp, w1, b1, w2, b2, w3, b3, w4, b4)

    return out_padded[:B, :output_dim]


def init_params(key, input_dim, hidden_dim, output_dim):
    """Deterministic init matching the PyTorch module's parameter shapes.
    Linear weights are stored pre-transposed as [in, out]."""
    ks = jax.random.split(key, 8)

    def linear(kw, kb, fan_in, fan_out):
        bound = 1.0 / jnp.sqrt(fan_in)
        w = jax.random.uniform(kw, (fan_in, fan_out), jnp.float32, -bound, bound)
        b = jax.random.uniform(kb, (1, fan_out), jnp.float32, -bound, bound)
        return w, b

    w1, b1 = linear(ks[0], ks[1], input_dim, hidden_dim)
    w2, b2 = linear(ks[2], ks[3], hidden_dim, hidden_dim)
    w3, b3 = linear(ks[4], ks[5], hidden_dim, hidden_dim)
    w4, b4 = linear(ks[6], ks[7], hidden_dim, output_dim)
    alphas = jnp.full((3,), 0.25, jnp.float32)  # nn.PReLU default init
    return dict(w1=w1, b1=b1, w2=w2, b2=b2, w3=w3, b3=b3, w4=w4, b4=b4,
                alphas=alphas)


def mlp_reference(x, p):
    """Pure-JAX f32 reference for correctness checking."""
    def prelu(h, a):
        return jnp.where(h > 0, h, a * h)
    h = prelu(x @ p["w1"] + p["b1"], p["alphas"][0])
    h = prelu(h @ p["w2"] + p["b2"], p["alphas"][1])
    h = prelu(h @ p["w3"] + p["b3"], p["alphas"][2])
    return h @ p["w4"] + p["b4"]


if __name__ == "__main__":
    input_dim, hidden_dim, output_dim = 32, 64, 16
    B = 8

    key = jax.random.PRNGKey(0)
    kx, kp = jax.random.split(key)
    x = jax.random.normal(kx, (B, input_dim), jnp.float32)
    params = init_params(kp, input_dim, hidden_dim, output_dim)

    out = mlp_forward(x, params)              # bf16 operands, f32 accumulate
    out = jax.block_until_ready(out)

    ref = mlp_reference(x, params)            # f32 reference
    assert out.shape == (B, output_dim)
    assert jnp.allclose(out, ref, atol=5e-2, rtol=5e-2), "mismatch vs reference"

    print("KERNEL_OK")
</pallas_src>

<mosaic_0001>
module attributes {stable_mosaic.version = 11 : i64} {
  func.func @mlp_kernel(%arg0: i32, %arg1: memref<3xf32, #tpu.memory_space<smem>>, %arg2: memref<8x128xbf16, #tpu.memory_space<vmem>>, %arg3: memref<128x128xbf16, #tpu.memory_space<vmem>>, %arg4: memref<1x128xf32, #tpu.memory_space<vmem>>, %arg5: memref<128x128xbf16, #tpu.memory_space<vmem>>, %arg6: memref<1x128xf32, #tpu.memory_space<vmem>>, %arg7: memref<128x128xbf16, #tpu.memory_space<vmem>>, %arg8: memref<1x128xf32, #tpu.memory_space<vmem>>, %arg9: memref<128x128xbf16, #tpu.memory_space<vmem>>, %arg10: memref<1x128xf32, #tpu.memory_space<vmem>>, %arg11: memref<8x128xf32, #tpu.memory_space<vmem>>) attributes {dimension_semantics = [#tpu.dimension_semantics<parallel>], iteration_bounds = array<i64: 1>, scalar_prefetch = 0 : i64, scratch_operands = 0 : i64, tpu.core_type = #tpu.core_type<tc>, window_params = [{transform_indices = @transform_0, window_bounds = array<i64: 3>}, {transform_indices = @transform_1, window_bounds = array<i64: 8, 128>}, {pipeline_mode = #tpu.pipeline_mode<synchronous>, transform_indices = @transform_2, window_bounds = array<i64: 128, 128>}, {pipeline_mode = #tpu.pipeline_mode<synchronous>, transform_indices = @transform_3, window_bounds = array<i64: 1, 128>}, {pipeline_mode = #tpu.pipeline_mode<synchronous>, transform_indices = @transform_4, window_bounds = array<i64: 128, 128>}, {pipeline_mode = #tpu.pipeline_mode<synchronous>, transform_indices = @transform_5, window_bounds = array<i64: 1, 128>}, {pipeline_mode = #tpu.pipeline_mode<synchronous>, transform_indices = @transform_6, window_bounds = array<i64: 128, 128>}, {pipeline_mode = #tpu.pipeline_mode<synchronous>, transform_indices = @transform_7, window_bounds = array<i64: 1, 128>}, {pipeline_mode = #tpu.pipeline_mode<synchronous>, transform_indices = @transform_8, window_bounds = array<i64: 128, 128>}, {pipeline_mode = #tpu.pipeline_mode<synchronous>, transform_indices = @transform_9, window_bounds = array<i64: 1, 128>}, {transform_indices = @transform_10, window_bounds = array<i64: 8, 128>}]} {
    %c0 = arith.constant 0 : index
    %0 = memref.load %arg1[%c0] : memref<3xf32, #tpu.memory_space<smem>>
    %c1 = arith.constant 1 : index
    %1 = memref.load %arg1[%c1] : memref<3xf32, #tpu.memory_space<smem>>
    %c2 = arith.constant 2 : index
    %2 = memref.load %arg1[%c2] : memref<3xf32, #tpu.memory_space<smem>>
    %c0_0 = arith.constant 0 : index
    %c0_1 = arith.constant 0 : index
    %3 = vector.load %arg2[%c0_0, %c0_1] : memref<8x128xbf16, #tpu.memory_space<vmem>>, vector<8x128xbf16>
    %c0_2 = arith.constant 0 : index
    %c0_3 = arith.constant 0 : index
    %4 = vector.load %arg3[%c0_2, %c0_3] : memref<128x128xbf16, #tpu.memory_space<vmem>>, vector<128x128xbf16>
    %cst = arith.constant dense<0.000000e+00> : vector<8x128xf32>
    %5 = tpu.matmul %3, %4, %cst {dimension_numbers = #tpu.dot_dimension_numbers<[1], [0], [0], [1], [0, 0, 1, 1], [], []>} : vector<8x128xbf16>, vector<128x128xbf16>, vector<8x128xf32> -> vector<8x128xf32>
    %c0_4 = arith.constant 0 : index
    %c0_5 = arith.constant 0 : index
    %6 = vector.load %arg4[%c0_4, %c0_5] : memref<1x128xf32, #tpu.memory_space<vmem>>, vector<1x128xf32>
    %7 = vector.broadcast %6 : vector<1x128xf32> to vector<8x128xf32>
    %8 = arith.addf %5, %7 : vector<8x128xf32>
    %cst_6 = arith.constant 0.000000e+00 : f32
    %9 = vector.broadcast %cst_6 : f32 to vector<8x128xf32>
    %10 = arith.cmpf ogt, %8, %9 : vector<8x128xf32>
    %11 = vector.broadcast %0 : f32 to vector<8x128xf32>
    %12 = arith.mulf %11, %8 : vector<8x128xf32>
    %13 = arith.select %10, %8, %12 : vector<8x128xi1>, vector<8x128xf32>
    %14 = arith.truncf %13 : vector<8x128xf32> to vector<8x128xbf16>
    %c0_7 = arith.constant 0 : index
    %c0_8 = arith.constant 0 : index
    %15 = vector.load %arg5[%c0_7, %c0_8] : memref<128x128xbf16, #tpu.memory_space<vmem>>, vector<128x128xbf16>
    %cst_9 = arith.constant dense<0.000000e+00> : vector<8x128xf32>
    %16 = tpu.matmul %14, %15, %cst_9 {dimension_numbers = #tpu.dot_dimension_numbers<[1], [0], [0], [1], [0, 0, 1, 1], [], []>} : vector<8x128xbf16>, vector<128x128xbf16>, vector<8x128xf32> -> vector<8x128xf32>
    %c0_10 = arith.constant 0 : index
    %c0_11 = arith.constant 0 : index
    %17 = vector.load %arg6[%c0_10, %c0_11] : memref<1x128xf32, #tpu.memory_space<vmem>>, vector<1x128xf32>
    %18 = vector.broadcast %17 : vector<1x128xf32> to vector<8x128xf32>
    %19 = arith.addf %16, %18 : vector<8x128xf32>
    %cst_12 = arith.constant 0.000000e+00 : f32
    %20 = vector.broadcast %cst_12 : f32 to vector<8x128xf32>
    %21 = arith.cmpf ogt, %19, %20 : vector<8x128xf32>
    %22 = vector.broadcast %1 : f32 to vector<8x128xf32>
    %23 = arith.mulf %22, %19 : vector<8x128xf32>
    %24 = arith.select %21, %19, %23 : vector<8x128xi1>, vector<8x128xf32>
    %25 = arith.truncf %24 : vector<8x128xf32> to vector<8x128xbf16>
    %c0_13 = arith.constant 0 : index
    %c0_14 = arith.constant 0 : index
    %26 = vector.load %arg7[%c0_13, %c0_14] : memref<128x128xbf16, #tpu.memory_space<vmem>>, vector<128x128xbf16>
    %cst_15 = arith.constant dense<0.000000e+00> : vector<8x128xf32>
    %27 = tpu.matmul %25, %26, %cst_15 {dimension_numbers = #tpu.dot_dimension_numbers<[1], [0], [0], [1], [0, 0, 1, 1], [], []>} : vector<8x128xbf16>, vector<128x128xbf16>, vector<8x128xf32> -> vector<8x128xf32>
    %c0_16 = arith.constant 0 : index
    %c0_17 = arith.constant 0 : index
    %28 = vector.load %arg8[%c0_16, %c0_17] : memref<1x128xf32, #tpu.memory_space<vmem>>, vector<1x128xf32>
    %29 = vector.broadcast %28 : vector<1x128xf32> to vector<8x128xf32>
    %30 = arith.addf %27, %29 : vector<8x128xf32>
    %cst_18 = arith.constant 0.000000e+00 : f32
    %31 = vector.broadcast %cst_18 : f32 to vector<8x128xf32>
    %32 = arith.cmpf ogt, %30, %31 : vector<8x128xf32>
    %33 = vector.broadcast %2 : f32 to vector<8x128xf32>
    %34 = arith.mulf %33, %30 : vector<8x128xf32>
    %35 = arith.select %32, %30, %34 : vector<8x128xi1>, vector<8x128xf32>
    %36 = arith.truncf %35 : vector<8x128xf32> to vector<8x128xbf16>
    %c0_19 = arith.constant 0 : index
    %c0_20 = arith.constant 0 : index
    %37 = vector.load %arg9[%c0_19, %c0_20] : memref<128x128xbf16, #tpu.memory_space<vmem>>, vector<128x128xbf16>
    %cst_21 = arith.constant dense<0.000000e+00> : vector<8x128xf32>
    %38 = tpu.matmul %36, %37, %cst_21 {dimension_numbers = #tpu.dot_dimension_numbers<[1], [0], [0], [1], [0, 0, 1, 1], [], []>} : vector<8x128xbf16>, vector<128x128xbf16>, vector<8x128xf32> -> vector<8x128xf32>
    %c0_22 = arith.constant 0 : index
    %c0_23 = arith.constant 0 : index
    %39 = vector.load %arg10[%c0_22, %c0_23] : memref<1x128xf32, #tpu.memory_space<vmem>>, vector<1x128xf32>
    %40 = vector.broadcast %39 : vector<1x128xf32> to vector<8x128xf32>
    %41 = arith.addf %38, %40 : vector<8x128xf32>
    %c0_24 = arith.constant 0 : index
    %c0_25 = arith.constant 0 : index
    %42 = vector.load %arg11[%c0_24, %c0_25] : memref<8x128xf32, #tpu.memory_space<vmem>>, vector<8x128xf32>
    tpu.vector_store %arg11[%c0_24, %c0_25], %41 {strides = array<i32>} : memref<8x128xf32, #tpu.memory_space<vmem>>, vector<8x128xf32>,
    return
  }
  func.func @transform_0(%arg0: i32) -> i32 {
    %c0_i32 = arith.constant 0 : i32
    %c0_i32_0 = arith.constant 0 : i32
    return %c0_i32 : i32
  }
  func.func @transform_1(%arg0: i32) -> (i32, i32) {
    %c0_i32 = arith.constant 0 : i32
    %c0_i32_0 = arith.constant 0 : i32
    return %arg0, %c0_i32 : i32, i32
  }
  func.func @transform_2(%arg0: i32) -> (i32, i32) {
    %c0_i32 = arith.constant 0 : i32
    %c0_i32_0 = arith.constant 0 : i32
    %c0_i32_1 = arith.constant 0 : i32
    return %c0_i32, %c0_i32_0 : i32, i32
  }
  func.func @transform_3(%arg0: i32) -> (i32, i32) {
    %c0_i32 = arith.constant 0 : i32
    %c0_i32_0 = arith.constant 0 : i32
    %c0_i32_1 = arith.constant 0 : i32
    return %c0_i32, %c0_i32_0 : i32, i32
  }
  func.func @transform_4(%arg0: i32) -> (i32, i32) {
    %c0_i32 = arith.constant 0 : i32
    %c0_i32_0 = arith.constant 0 : i32
    %c0_i32_1 = arith.constant 0 : i32
    return %c0_i32, %c0_i32_0 : i32, i32
  }
  func.func @transform_5(%arg0: i32) -> (i32, i32) {
    %c0_i32 = arith.constant 0 : i32
    %c0_i32_0 = arith.constant 0 : i32
    %c0_i32_1 = arith.constant 0 : i32
    return %c0_i32, %c0_i32_0 : i32, i32
  }
  func.func @transform_6(%arg0: i32) -> (i32, i32) {
    %c0_i32 = arith.constant 0 : i32
    %c0_i32_0 = arith.constant 0 : i32
    %c0_i32_1 = arith.constant 0 : i32
    return %c0_i32, %c0_i32_0 : i32, i32
  }
  func.func @transform_7(%arg0: i32) -> (i32, i32) {
    %c0_i32 = arith.constant 0 : i32
    %c0_i32_0 = arith.constant 0 : i32
    %c0_i32_1 = arith.constant 0 : i32
    return %c0_i32, %c0_i32_0 : i32, i32
  }
  func.func @transform_8(%arg0: i32) -> (i32, i32) {
    %c0_i32 = arith.constant 0 : i32
    %c0_i32_0 = arith.constant 0 : i32
    %c0_i32_1 = arith.constant 0 : i32
    return %c0_i32, %c0_i32_0 : i32, i32
  }
  func.func @transform_9(%arg0: i32) -> (i32, i32) {
    %c0_i32 = arith.constant 0 : i32
    %c0_i32_0 = arith.constant 0 : i32
    %c0_i32_1 = arith.constant 0 : i32
    return %c0_i32, %c0_i32_0 : i32, i32
  }
  func.func @transform_10(%arg0: i32) -> (i32, i32) {
    %c0_i32 = arith.constant 0 : i32
    %c0_i32_0 = arith.constant 0 : i32
    return %arg0, %c0_i32 : i32, i32
  }
}

</mosaic_0001>

<llo_original>
// kernel: tpu_custom_call.1
$region0: #{tpu_custom_call.1}
  #allocation0 [shape = 'u32[]', space=smem, size = 0x4, offset = 0x4, fixed_abs, tag = 'smem constant byte address 0x4 - core index']
  #allocation1 [shape = 'u32[72,128]{1,0:T(1,128)}', space=vmem, size = 0x9000, scoped, tag = 'internal scratch']
  %s0 = inlined_call_operand.hbm [shape: f32[3], index: 0, kind: input, shape index: {}]
  %s1 = inlined_call_operand.hbm [shape: bf16[8,128], index: 1, kind: input, shape index: {}]
  %s2 = inlined_call_operand.hbm [shape: bf16[128,128], index: 2, kind: input, shape index: {}]
  %s3 = inlined_call_operand.vmem [shape: f32[1,128], index: 3, kind: input, shape index: {}]
  %s4 = inlined_call_operand.hbm [shape: bf16[128,128], index: 4, kind: input, shape index: {}]
  %s5 = inlined_call_operand.vmem [shape: f32[1,128], index: 5, kind: input, shape index: {}]
  %s6 = inlined_call_operand.hbm [shape: bf16[128,128], index: 6, kind: input, shape index: {}]
  %s7 = inlined_call_operand.vmem [shape: f32[1,128], index: 7, kind: input, shape index: {}]
  %s8 = inlined_call_operand.hbm [shape: bf16[128,128], index: 8, kind: input, shape index: {}]
  %s9 = inlined_call_operand.vmem [shape: f32[1,128], index: 9, kind: input, shape index: {}]
  %s10 = inlined_call_operand.hbm [shape: f32[8,128], index: 10, kind: output, shape index: {}]
  %s11 = sld [smem:[#allocation0]]
  $region74: #{tpu_custom_call.1} parent=0
    _
  %s13 = ssub.s32 1, %s11
  %s14 = scalar_select 0, %s13, %s11
  $region1: #{tpu_custom_call.1} parent=0
    #allocation2 [shape = 'u8[512]{0}', space=smem, size = 0x200, scoped, tag = 'input window, operand 0, single buffered']
    #allocation3 [shape = 's32[1]{0}', space=sflag, size = 0x4, scoped, tag = 'scoped memory for tpu_custom_call.1']
    #allocation4 [shape = 's32[1]{0}', space=sflag, size = 0x4, scoped, tag = 'scoped memory for tpu_custom_call.1']
    #allocation5 [shape = 's32[1]{0}', space=sflag, size = 0x4, scoped, tag = 'scoped memory for tpu_custom_call.1']
    #allocation6 [shape = 'u8[2048]{0}', space=vmem, size = 0x800, scoped, tag = 'input window, operand 1, single buffered']
    #allocation7 [shape = 'u8[32768]{0}', space=vmem, size = 0x8000, scoped, tag = 'input window, operand 2, single buffered']
    #allocation8 [shape = 's32[1]{0}', space=sflag, size = 0x4, scoped, tag = 'scoped memory for tpu_custom_call.1']
    #allocation9 [shape = 'u8[32768]{0}', space=vmem, size = 0x8000, scoped, tag = 'input window, operand 4, single buffered']
    #allocation10 [shape = 'u8[32768]{0}', space=vmem, size = 0x8000, scoped, tag = 'input window, operand 6, single buffered']
    #allocation11 [shape = 's32[1]{0}', space=sflag, size = 0x4, scoped, tag = 'scoped memory for tpu_custom_call.1']
    #allocation12 [shape = 'u8[32768]{0}', space=vmem, size = 0x8000, scoped, tag = 'input window, operand 8, single buffered']
    #allocation13 [shape = 'u8[4096]{0}', space=vmem, size = 0x1000, scoped, tag = 'output window, operand 0, single buffered']
    %15 = vsyncpa [#allocation5], 0
    %16 = vsyncpa [#allocation3], 0
    %17 = vsyncpa [#allocation8], 0
    %18 = vsyncpa [#allocation11], 0
    %19 = vsyncpa [#allocation4], 0
    // Predicated region
    $region2: #{tpu_custom_call.1} parent=1 // pred_check
      _
    $region3: #{tpu_custom_call.1} parent=1 // pred_check_branch
      %21 = sbr.rel (0) target = $region5
    $region4: #{tpu_custom_call.1} parent=1 // pred_region
      %23 = vsyncadd [#allocation5], 0
      %s25 = sshll.u32 %s0, 4
      %s26 = int_to_ptr.hbm [resolvable:$true] %s25
      %28 = dma.hbm_to_smem %s26, 16, [#allocation2], [#allocation5]
    $region5: #{tpu_custom_call.1} parent=1 // pred_fallthru
      _
    // Predicated region
    $region6: #{tpu_custom_call.1} parent=1 // pred_check
      _
    $region7: #{tpu_custom_call.1} parent=1 // pred_check_branch
      %30 = sbr.rel (0) target = $region9
    $region8: #{tpu_custom_call.1} parent=1 // pred_region
      %32 = vsyncadd [#allocation3], 0
      %s34 = sshll.u32 %s1, 4
      %s35 = int_to_ptr.hbm [resolvable:$true] %s34
      %s36 = sshll.u32 [#allocation6], 4
      %s37 = int_to_ptr.vmem [resolvable:$true] %s36
      %39 = dma.hbm_to_vmem [thread:$0]  %s35, 64, %s37, [#allocation3]
    $region9: #{tpu_custom_call.1} parent=1 // pred_fallthru
      _
    // Predicated region
    $region10: #{tpu_custom_call.1} parent=1 // pred_check
      _
    $region11: #{tpu_custom_call.1} parent=1 // pred_check_branch
      %41 = sbr.rel (0) target = $region13
    $region12: #{tpu_custom_call.1} parent=1 // pred_region
      %43 = vsyncadd [#allocation8], 0
      %s44 = sshll.u32 %s2, 4
      %s45 = int_to_ptr.hbm [resolvable:$true] %s44
      %s46 = sshll.u32 [#allocation7], 4
      %s47 = int_to_ptr.vmem [resolvable:$true] %s46
      %52 = dma.hbm_to_vmem [thread:$0]  %s45, 1024, %s47, [#allocation8], 64, 64, 4
    $region13: #{tpu_custom_call.1} parent=1 // pred_fallthru
      _
    // Predicated region
    $region14: #{tpu_custom_call.1} parent=1 // pred_check
      _
    $region15: #{tpu_custom_call.1} parent=1 // pred_check_branch
      %54 = sbr.rel (0) target = $region17
    $region16: #{tpu_custom_call.1} parent=1 // pred_region
      _
    $region17: #{tpu_custom_call.1} parent=1 // pred_fallthru
      _
    // Predicated region
    $region18: #{tpu_custom_call.1} parent=1 // pred_check
      _
    $region19: #{tpu_custom_call.1} parent=1 // pred_check_branch
      %56 = sbr.rel (0) target = $region21
    $region20: #{tpu_custom_call.1} parent=1 // pred_region
      %58 = vsyncadd [#allocation8], 0
      %s59 = sshll.u32 %s4, 4
      %s60 = int_to_ptr.hbm [resolvable:$true] %s59
      %s61 = sshll.u32 [#allocation9], 4
      %s62 = int_to_ptr.vmem [resolvable:$true] %s61
      %67 = dma.hbm_to_vmem [thread:$0]  %s60, 1024, %s62, [#allocation8], 64, 64, 4
    $region21: #{tpu_custom_call.1} parent=1 // pred_fallthru
      _
    // Predicated region
    $region22: #{tpu_custom_call.1} parent=1 // pred_check
      _
    $region23: #{tpu_custom_call.1} parent=1 // pred_check_branch
      %69 = sbr.rel (0) target = $region25
    $region24: #{tpu_custom_call.1} parent=1 // pred_region
      _
    $region25: #{tpu_custom_call.1} parent=1 // pred_fallthru
      _
    // Predicated region
    $region26: #{tpu_custom_call.1} parent=1 // pred_check
      _
    $region27: #{tpu_custom_call.1} parent=1 // pred_check_branch
      %71 = sbr.rel (0) target = $region29
    $region28: #{tpu_custom_call.1} parent=1 // pred_region
      %73 = vsyncadd [#allocation11], 0
      %s74 = sshll.u32 %s6, 4
      %s75 = int_to_ptr.hbm [resolvable:$true] %s74
      %s76 = sshll.u32 [#allocation10], 4
      %s77 = int_to_ptr.vmem [resolvable:$true] %s76
      %82 = dma.hbm_to_vmem [thread:$0]  %s75, 1024, %s77, [#allocation11], 64, 64, 4
    $region29: #{tpu_custom_call.1} parent=1 // pred_fallthru
      _
    // Predicated region
    $region30: #{tpu_custom_call.1} parent=1 // pred_check
      _
    $region31: #{tpu_custom_call.1} parent=1 // pred_check_branch
      %84 = sbr.rel (0) target = $region33
    $region32: #{tpu_custom_call.1} parent=1 // pred_region
      _
    $region33: #{tpu_custom_call.1} parent=1 // pred_fallthru
      _
    // Predicated region
    $region34: #{tpu_custom_call.1} parent=1 // pred_check
      _
    $region35: #{tpu_custom_call.1} parent=1 // pred_check_branch
      %86 = sbr.rel (0) target = $region37
    $region36: #{tpu_custom_call.1} parent=1 // pred_region
      %88 = vsyncadd [#allocation11], 0
      %s89 = sshll.u32 %s8, 4
      %s90 = int_to_ptr.hbm [resolvable:$true] %s89
      %s91 = sshll.u32 [#allocation12], 4
      %s92 = int_to_ptr.vmem [resolvable:$true] %s91
      %97 = dma.hbm_to_vmem [thread:$0]  %s90, 1024, %s92, [#allocation11], 64, 64, 4
    $region37: #{tpu_custom_call.1} parent=1 // pred_fallthru
      _
    // Predicated region
    $region38: #{tpu_custom_call.1} parent=1 // pred_check
      _
    $region39: #{tpu_custom_call.1} parent=1 // pred_check_branch
      %99 = sbr.rel (0) target = $region41
    $region40: #{tpu_custom_call.1} parent=1 // pred_region
      _
    $region41: #{tpu_custom_call.1} parent=1 // pred_fallthru
      _
    // Predicated region
    $region42: #{tpu_custom_call.1} parent=1 // pred_check
      _
    $region43: #{tpu_custom_call.1} parent=1 // pred_check_branch
      %101 = sbr.rel (0) target = $region45
    $region44: #{tpu_custom_call.1} parent=1 // pred_region
      %103 = dma.done [#allocation5], 16
    $region45: #{tpu_custom_call.1} parent=1 // pred_fallthru
      _
    // Predicated region
    $region46: #{tpu_custom_call.1} parent=1 // pred_check
      _
    $region47: #{tpu_custom_call.1} parent=1 // pred_check_branch
      %105 = sbr.rel (0) target = $region49
    $region48: #{tpu_custom_call.1} parent=1 // pred_region
      %107 = dma.done [#allocation3], 64
    $region49: #{tpu_custom_call.1} parent=1 // pred_fallthru
      _
    // Predicated region
    $region50: #{tpu_custom_call.1} parent=1 // pred_check
      _
    $region51: #{tpu_custom_call.1} parent=1 // pred_check_branch
      %109 = sbr.rel (0) target = $region53
    $region52: #{tpu_custom_call.1} parent=1 // pred_region
      %111 = dma.done [#allocation8], 1024
    $region53: #{tpu_custom_call.1} parent=1 // pred_fallthru
      _
    // Predicated region
    $region54: #{tpu_custom_call.1} parent=1 // pred_check
      _
    $region55: #{tpu_custom_call.1} parent=1 // pred_check_branch
      %113 = sbr.rel (0) target = $region57
    $region56: #{tpu_custom_call.1} parent=1 // pred_region
      %115 = dma.done [#allocation8], 1024
    $region57: #{tpu_custom_call.1} parent=1 // pred_fallthru
      _
    // Predicated region
    $region58: #{tpu_custom_call.1} parent=1 // pred_check
      _
    $region59: #{tpu_custom_call.1} parent=1 // pred_check_branch
      %117 = sbr.rel (0) target = $region61
    $region60: #{tpu_custom_call.1} parent=1 // pred_region
      %119 = dma.done [#allocation11], 1024
    $region61: #{tpu_custom_call.1} parent=1 // pred_fallthru
      _
    // Predicated region
    $region62: #{tpu_custom_call.1} parent=1 // pred_check
      _
    $region63: #{tpu_custom_call.1} parent=1 // pred_check_branch
      %121 = sbr.rel (0) target = $region65
    $region64: #{tpu_custom_call.1} parent=1 // pred_region
      %123 = dma.done [#allocation11], 1024
    $region65: #{tpu_custom_call.1} parent=1 // pred_fallthru
      _
    %124 = sfence
    %s125 = sld [smem:[#allocation2]]
    %s126 = sld [smem:[#allocation2 + $0x1]]
    %s127 = sld [smem:[#allocation2 + $0x2]]
    %v128 = vld [vmem:[#allocation6] sm:$0xf]
    %v129 = vld [vmem:[#allocation7] sm:$0xf]
    %v130 = vld [vmem:[#allocation7 + $0x4] sm:$0xf]
    %v131 = vld [vmem:[#allocation7 + $0x8] sm:$0xf]
    %v132 = vld [vmem:[#allocation7 + $0xc] sm:$0xf]
    %v133 = vld [vmem:[#allocation7 + $0x10] sm:$0xf]
    %v134 = vld [vmem:[#allocation7 + $0x14] sm:$0xf]
    %v135 = vld [vmem:[#allocation7 + $0x18] sm:$0xf]
    %v136 = vld [vmem:[#allocation7 + $0x1c] sm:$0xf]
    %v137 = vld [vmem:[#allocation7 + $0x20] sm:$0xf]
    %v138 = vld [vmem:[#allocation7 + $0x24] sm:$0xf]
    %v139 = vld [vmem:[#allocation7 + $0x28] sm:$0xf]
    %v140 = vld [vmem:[#allocation7 + $0x2c] sm:$0xf]
    %v141 = vld [vmem:[#allocation7 + $0x30] sm:$0xf]
    %v142 = vld [vmem:[#allocation7 + $0x34] sm:$0xf]
    %v143 = vld [vmem:[#allocation7 + $0x38] sm:$0xf]
    %v144 = vld [vmem:[#allocation7 + $0x3c] sm:$0xf]
    %v145 = vld [vmem:[%s3] sm:$0x1]
    %v147 = vperm.slane %v145, 0
    %v165 = vunpack.c.l.b16 %v129
    %v166 = vunpack.c.l.b16 %v130
    %v167 = vunpack.c.l.b16 %v131
    %v168 = vunpack.c.l.b16 %v132
    %v169 = vunpack.c.l.b16 %v133
    %v170 = vunpack.c.l.b16 %v134
    %v171 = vunpack.c.l.b16 %v135
    %v172 = vunpack.c.l.b16 %v136
    %v173 = vunpack.c.l.b16 %v137
    %v174 = vunpack.c.l.b16 %v138
    %v175 = vunpack.c.l.b16 %v139
    %v176 = vunpack.c.l.b16 %v140
    %v177 = vunpack.c.l.b16 %v141
    %v178 = vunpack.c.l.b16 %v142
    %v179 = vunpack.c.l.b16 %v143
    %v180 = vunpack.c.l.b16 %v144
    %v181 = vpack.c.b16 %v166, %v165
    %v182 = vpack.c.b16 %v168, %v167
    %v183 = vpack.c.b16 %v170, %v169
    %v184 = vpack.c.b16 %v172, %v171
    %v185 = vpack.c.b16 %v174, %v173
    %v186 = vpack.c.b16 %v176, %v175
    %v187 = vpack.c.b16 %v178, %v177
    %v188 = vpack.c.b16 %v180, %v179
    %197 = vmatpush.bf16.msra.mxu0 %v188
    %198 = vmatpush.bf16.msra.mxu0 %v187
    %199 = vmatpush.bf16.msra.mxu0 %v186
    %200 = vmatpush.bf16.msra.mxu0 %v185
    %201 = vmatpush.bf16.msra.mxu0 %v184
    %202 = vmatpush.bf16.msra.mxu0 %v183
    %203 = vmatpush.bf16.msra.mxu0 %v182
    %204 = vmatpush.bf16.msra.mxu0 %v181
    %205 = vmatmul.bf16.gmra.mxu0 %v128
    %v206 = vpop.f32.mrf.mxu0
    %v207 = vadd.f32 %v147, %v206
    %v208 = vpop.f32.mrf.mxu0
    %209 = vdwg.mxu0
    %vm210 = vcmp.gt.f32.partialorder %v207, 0.0
    %v211 = vstv %s125
    %v212 = vmul.f32 %v211, %v207
    %v213 = vsel %vm210, %v207, %v212
    %v214 = vpack.c.bf16 %v213, %v213
    %v215 = vld [vmem:[#allocation9] sm:$0xf]
    %v216 = vld [vmem:[#allocation9 + $0x4] sm:$0xf]
    %v217 = vld [vmem:[#allocation9 + $0x8] sm:$0xf]
    %v218 = vld [vmem:[#allocation9 + $0xc] sm:$0xf]
    %v219 = vld [vmem:[#allocation9 + $0x10] sm:$0xf]
    %v220 = vld [vmem:[#allocation9 + $0x14] sm:$0xf]
    %v221 = vld [vmem:[#allocation9 + $0x18] sm:$0xf]
    %v222 = vld [vmem:[#allocation9 + $0x1c] sm:$0xf]
    %v223 = vld [vmem:[#allocation9 + $0x20] sm:$0xf]
    %v224 = vld [vmem:[#allocation9 + $0x24] sm:$0xf]
    %v225 = vld [vmem:[#allocation9 + $0x28] sm:$0xf]
    %v226 = vld [vmem:[#allocation9 + $0x2c] sm:$0xf]
    %v227 = vld [vmem:[#allocation9 + $0x30] sm:$0xf]
    %v228 = vld [vmem:[#allocation9 + $0x34] sm:$0xf]
    %v229 = vld [vmem:[#allocation9 + $0x38] sm:$0xf]
    %v230 = vld [vmem:[#allocation9 + $0x3c] sm:$0xf]
    %v231 = vld [vmem:[%s5] sm:$0x1]
    %v233 = vperm.slane %v231, 0
    %v251 = vunpack.c.l.b16 %v215
    %v252 = vunpack.c.l.b16 %v216
    %v253 = vunpack.c.l.b16 %v217
    %v254 = vunpack.c.l.b16 %v218
    %v255 = vunpack.c.l.b16 %v219
    %v256 = vunpack.c.l.b16 %v220
    %v257 = vunpack.c.l.b16 %v221
    %v258 = vunpack.c.l.b16 %v222
    %v259 = vunpack.c.l.b16 %v223
    %v260 = vunpack.c.l.b16 %v224
    %v261 = vunpack.c.l.b16 %v225
    %v262 = vunpack.c.l.b16 %v226
    %v263 = vunpack.c.l.b16 %v227
    %v264 = vunpack.c.l.b16 %v228
    %v265 = vunpack.c.l.b16 %v229
    %v266 = vunpack.c.l.b16 %v230
    %v267 = vpack.c.b16 %v252, %v251
    %v268 = vpack.c.b16 %v254, %v253
    %v269 = vpack.c.b16 %v256, %v255
    %v270 = vpack.c.b16 %v258, %v257
    %v271 = vpack.c.b16 %v260, %v259
    %v272 = vpack.c.b16 %v262, %v261
    %v273 = vpack.c.b16 %v264, %v263
    %v274 = vpack.c.b16 %v266, %v265
    %283 = vmatpush.bf16.msra.mxu0 %v274
    %284 = vmatpush.bf16.msra.mxu0 %v273
    %285 = vmatpush.bf16.msra.mxu0 %v272
    %286 = vmatpush.bf16.msra.mxu0 %v271
    %287 = vmatpush.bf16.msra.mxu0 %v270
    %288 = vmatpush.bf16.msra.mxu0 %v269
    %289 = vmatpush.bf16.msra.mxu0 %v268
    %290 = vmatpush.bf16.msra.mxu0 %v267
    %291 = vmatmul.bf16.gmra.mxu0 %v214
    %v292 = vpop.f32.mrf.mxu0
    %v293 = vadd.f32 %v233, %v292
    %v294 = vpop.f32.mrf.mxu0
    %295 = vdwg.mxu0
    %vm296 = vcmp.gt.f32.partialorder %v293, 0.0
    %v297 = vstv %s126
    %v298 = vmul.f32 %v297, %v293
    %v299 = vsel %vm296, %v293, %v298
    %v300 = vpack.c.bf16 %v299, %v299
    %v301 = vld [vmem:[#allocation10] sm:$0xf]
    %v302 = vld [vmem:[#allocation10 + $0x4] sm:$0xf]
    %v303 = vld [vmem:[#allocation10 + $0x8] sm:$0xf]
    %v304 = vld [vmem:[#allocation10 + $0xc] sm:$0xf]
    %v305 = vld [vmem:[#allocation10 + $0x10] sm:$0xf]
    %v306 = vld [vmem:[#allocation10 + $0x14] sm:$0xf]
    %v307 = vld [vmem:[#allocation10 + $0x18] sm:$0xf]
    %v308 = vld [vmem:[#allocation10 + $0x1c] sm:$0xf]
    %v309 = vld [vmem:[#allocation10 + $0x20] sm:$0xf]
    %v310 = vld [vmem:[#allocation10 + $0x24] sm:$0xf]
    %v311 = vld [vmem:[#allocation10 + $0x28] sm:$0xf]
    %v312 = vld [vmem:[#allocation10 + $0x2c] sm:$0xf]
    %v313 = vld [vmem:[#allocation10 + $0x30] sm:$0xf]
    %v314 = vld [vmem:[#allocation10 + $0x34] sm:$0xf]
    %v315 = vld [vmem:[#allocation10 + $0x38] sm:$0xf]
    %v316 = vld [vmem:[#allocation10 + $0x3c] sm:$0xf]
    %v317 = vld [vmem:[%s7] sm:$0x1]
    %v319 = vperm.slane %v317, 0
    %v337 = vunpack.c.l.b16 %v301
    %v338 = vunpack.c.l.b16 %v302
    %v339 = vunpack.c.l.b16 %v303
    %v340 = vunpack.c.l.b16 %v304
    %v341 = vunpack.c.l.b16 %v305
    %v342 = vunpack.c.l.b16 %v306
    %v343 = vunpack.c.l.b16 %v307
    %v344 = vunpack.c.l.b16 %v308
    %v345 = vunpack.c.l.b16 %v309
    %v346 = vunpack.c.l.b16 %v310
    %v347 = vunpack.c.l.b16 %v311
    %v348 = vunpack.c.l.b16 %v312
    %v349 = vunpack.c.l.b16 %v313
    %v350 = vunpack.c.l.b16 %v314
    %v351 = vunpack.c.l.b16 %v315
    %v352 = vunpack.c.l.b16 %v316
    %v353 = vpack.c.b16 %v338, %v337
    %v354 = vpack.c.b16 %v340, %v339
    %v355 = vpack.c.b16 %v342, %v341
    %v356 = vpack.c.b16 %v344, %v343
    %v357 = vpack.c.b16 %v346, %v345
    %v358 = vpack.c.b16 %v348, %v347
    %v359 = vpack.c.b16 %v350, %v349
    %v360 = vpack.c.b16 %v352, %v351
    %369 = vmatpush.bf16.msra.mxu0 %v360
    %370 = vmatpush.bf16.msra.mxu0 %v359
    %371 = vmatpush.bf16.msra.mxu0 %v358
    %372 = vmatpush.bf16.msra.mxu0 %v357
    %373 = vmatpush.bf16.msra.mxu0 %v356
    %374 = vmatpush.bf16.msra.mxu0 %v355
    %375 = vmatpush.bf16.msra.mxu0 %v354
    %376 = vmatpush.bf16.msra.mxu0 %v353
    %377 = vmatmul.bf16.gmra.mxu0 %v300
    %v378 = vpop.f32.mrf.mxu0
    %v379 = vadd.f32 %v319, %v378
    %v380 = vpop.f32.mrf.mxu0
    %381 = vdwg.mxu0
    %vm382 = vcmp.gt.f32.partialorder %v379, 0.0
    %v383 = vstv %s127
    %v384 = vmul.f32 %v383, %v379
    %v385 = vsel %vm382, %v379, %v384
    %v386 = vpack.c.bf16 %v385, %v385
    %v387 = vld [vmem:[#allocation12] sm:$0xf]
    %v388 = vld [vmem:[#allocation12 + $0x4] sm:$0xf]
    %v389 = vld [vmem:[#allocation12 + $0x8] sm:$0xf]
    %v390 = vld [vmem:[#allocation12 + $0xc] sm:$0xf]
    %v391 = vld [vmem:[#allocation12 + $0x10] sm:$0xf]
    %v392 = vld [vmem:[#allocation12 + $0x14] sm:$0xf]
    %v393 = vld [vmem:[#allocation12 + $0x18] sm:$0xf]
    %v394 = vld [vmem:[#allocation12 + $0x1c] sm:$0xf]
    %v395 = vld [vmem:[#allocation12 + $0x20] sm:$0xf]
    %v396 = vld [vmem:[#allocation12 + $0x24] sm:$0xf]
    %v397 = vld [vmem:[#allocation12 + $0x28] sm:$0xf]
    %v398 = vld [vmem:[#allocation12 + $0x2c] sm:$0xf]
    %v399 = vld [vmem:[#allocation12 + $0x30] sm:$0xf]
    %v400 = vld [vmem:[#allocation12 + $0x34] sm:$0xf]
    %v401 = vld [vmem:[#allocation12 + $0x38] sm:$0xf]
    %v402 = vld [vmem:[#allocation12 + $0x3c] sm:$0xf]
    %v403 = vld [vmem:[%s9] sm:$0x1]
    %v405 = vperm.slane %v403, 0
    %v423 = vunpack.c.l.b16 %v387
    %v424 = vunpack.c.l.b16 %v388
    %v425 = vunpack.c.l.b16 %v389
    %v426 = vunpack.c.l.b16 %v390
    %v427 = vunpack.c.l.b16 %v391
    %v428 = vunpack.c.l.b16 %v392
    %v429 = vunpack.c.l.b16 %v393
    %v430 = vunpack.c.l.b16 %v394
    %v431 = vunpack.c.l.b16 %v395
    %v432 = vunpack.c.l.b16 %v396
    %v433 = vunpack.c.l.b16 %v397
    %v434 = vunpack.c.l.b16 %v398
    %v435 = vunpack.c.l.b16 %v399
    %v436 = vunpack.c.l.b16 %v400
    %v437 = vunpack.c.l.b16 %v401
    %v438 = vunpack.c.l.b16 %v402
    %v439 = vpack.c.b16 %v424, %v423
    %v440 = vpack.c.b16 %v426, %v425
    %v441 = vpack.c.b16 %v428, %v427
    %v442 = vpack.c.b16 %v430, %v429
    %v443 = vpack.c.b16 %v432, %v431
    %v444 = vpack.c.b16 %v434, %v433
    %v445 = vpack.c.b16 %v436, %v435
    %v446 = vpack.c.b16 %v438, %v437
    %455 = vmatpush.bf16.msra.mxu0 %v446
    %456 = vmatpush.bf16.msra.mxu0 %v445
    %457 = vmatpush.bf16.msra.mxu0 %v444
    %458 = vmatpush.bf16.msra.mxu0 %v443
    %459 = vmatpush.bf16.msra.mxu0 %v442
    %460 = vmatpush.bf16.msra.mxu0 %v441
    %461 = vmatpush.bf16.msra.mxu0 %v440
    %462 = vmatpush.bf16.msra.mxu0 %v439
    %463 = vmatmul.bf16.gmra.mxu0 %v386
    %v464 = vpop.f32.mrf.mxu0
    %v465 = vadd.f32 %v405, %v464
    %v466 = vpop.f32.mrf.mxu0
    %467 = vdwg.mxu0
    %468 = vst [vmem:[#allocation13] sm:$0xff] %v465
    // Predicated region
    $region66: #{tpu_custom_call.1} parent=1 // pred_check
      _
    $region67: #{tpu_custom_call.1} parent=1 // pred_check_branch
      %470 = sbr.rel (0) target = $region69
    $region68: #{tpu_custom_call.1} parent=1 // pred_region
      %472 = vsyncadd [#allocation4], 0
      %s474 = sshll.u32 [#allocation13], 4
      %s475 = int_to_ptr.vmem [resolvable:$true] %s474
      %s476 = sshll.u32 %s10, 4
      %s477 = int_to_ptr.hbm [resolvable:$true] %s476
      %479 = dma.vmem_to_hbm [thread:$0]  %s475, 128, %s477, [#allocation4]
    $region69: #{tpu_custom_call.1} parent=1 // pred_fallthru
      _
    // Predicated region
    $region70: #{tpu_custom_call.1} parent=1 // pred_check
      _
    $region71: #{tpu_custom_call.1} parent=1 // pred_check_branch
      %481 = sbr.rel (0) target = $region73
    $region72: #{tpu_custom_call.1} parent=1 // pred_region
      %483 = dma.done [#allocation4], 128
    $region73: #{tpu_custom_call.1} parent=1 // pred_fallthru
      _
    %484 = vsyncpa [#allocation3], 1
    %485 = vsyncpa [#allocation8], 1
    %486 = vsyncpa [#allocation11], 1
    %487 = vsyncpa [#allocation4], 1
    %488 = vsyncpa [#allocation5], 1

</llo_original>
